<compile_context>
chip_gen: v7x
topology: tpu7x:2x2x1
jax: 0.10.0
libtpu: 0.0.40
codegen_flags: <defaults>
</compile_context>

<pallas_src>
import jax
import jax.numpy as jnp
from jax.experimental import pallas as pl
from jax.experimental.pallas import tpu as pltpu

EPS = 1e-5
LANE = 128                              # pad channel / K dims to multiples of the lane width
DEFAULT_TILE_ROWS = 2048                # row (pixel) tile; a few MiB double-buffered
VMEM_LIMIT_BYTES = 32 * 1024 * 1024     # safe scoped-VMEM limit on v5e/v6e/v7x


def _round_up(x: int, m: int) -> int:
    return (x + m - 1) // m * m


# ---------------------------------------------------------------------------
# Pallas kernels
# ---------------------------------------------------------------------------
def matmul_stats_kernel(p_ref, w_ref, h_ref, stats_ref):
    """Pass 1 (fully parallel over row tiles):
       h = patches @ W (bf16 x bf16 -> f32 MXU), stored as bf16;
       per-tile stats: row 0 = sum(h), row 1 = sum((h - tile_mean)^2) over the whole
       tile (zero-padded rows included; corrected exactly in the JAX combine)."""
    h = jnp.dot(p_ref[...], w_ref[...], preferred_element_type=jnp.float32)
    h_ref[...] = h.astype(h_ref.dtype)
    s = jnp.sum(h, axis=0, keepdims=True)                       # (1, C) f32
    c = s * (1.0 / h.shape[0])                                  # tile-local center
    m2 = jnp.sum(jnp.square(h - c), axis=0, keepdims=True)      # centered sumsq
    pad6 = jnp.zeros((6, h.shape[1]), jnp.float32)
    stats_ref[...] = jnp.concatenate([s, m2, pad6], axis=0)     # (8, C) lane-dense


def bn_relu_kernel(h_ref, scale_ref, shift_ref, o_ref):
    """Pass 2 (conv1): y = relu(h*scale + shift), f32 math on bf16 h."""
    y = h_ref[...].astype(jnp.float32) * scale_ref[...] + shift_ref[...]
    o_ref[...] = jnp.maximum(y, 0.0).astype(o_ref.dtype)


def make_bn_add_kernel(shortcut_relu: bool):
    """Pass 2 (conv2): y = h*scale + shift + shortcut (ReLU on shortcut for option 'A')."""
    def kernel(h_ref, scale_ref, shift_ref, sc_ref, o_ref):
        y = h_ref[...].astype(jnp.float32) * scale_ref[...] + shift_ref[...]
        sc = sc_ref[...].astype(jnp.float32)
        if shortcut_relu:
            sc = jnp.maximum(sc, 0.0)
        o_ref[...] = (y + sc).astype(o_ref.dtype)
    return kernel


# ---------------------------------------------------------------------------
# pallas_call wrappers
# ---------------------------------------------------------------------------
def _conv_stats(patches, w_mat, tile_rows):
    """Tiled MXU matmul + per-tile BN statistics. Returns (h_bf16, stats)."""
    rows_pad, k_pad = patches.shape
    cout_pad = w_mat.shape[1]
    n_tiles = rows_pad // tile_rows
    cost = pl.CostEstimate(
        flops=2 * rows_pad * k_pad * cout_pad + 4 * rows_pad * cout_pad,
        transcendentals=0,
        bytes_accessed=(patches.size * 2 + w_mat.size * 2
                        + rows_pad * cout_pad * 2 + n_tiles * 8 * cout_pad * 4),
    )
    return pl.pallas_call(
        matmul_stats_kernel,
        grid=(n_tiles,),
        in_specs=[
            pl.BlockSpec((tile_rows, k_pad), lambda i: (i, 0)),     # patch row tile
            pl.BlockSpec((k_pad, cout_pad), lambda i: (0, 0)),      # weights: resident
        ],
        out_specs=(
            pl.BlockSpec((tile_rows, cout_pad), lambda i: (i, 0)),  # h (pre-BN, bf16)
            pl.BlockSpec((8, cout_pad), lambda i: (i, 0)),          # per-tile stats
        ),
        out_shape=(
            jax.ShapeDtypeStruct((rows_pad, cout_pad), jnp.bfloat16),
            jax.ShapeDtypeStruct((n_tiles * 8, cout_pad), jnp.float32),
        ),
        compiler_params=pltpu.CompilerParams(
            dimension_semantics=("parallel",),        # independent row tiles (megacore)
            vmem_limit_bytes=VMEM_LIMIT_BYTES),
        cost_estimate=cost,
    )(patches, w_mat)


def _bn_scale_shift(stats, gamma, beta, rows, rows_pad, tile_rows):
    """Exact chunk-combine of per-tile BN stats (training-mode, biased variance) in JAX.
    Zero-padded rows (only in the last tile) are corrected analytically."""
    cout_pad = stats.shape[1]
    n_tiles = stats.shape[0] // 8
    st = stats.reshape(n_tiles, 8, cout_pad)
    sums = st[:, 0, :]                                   # (n_tiles, C)
    m2 = st[:, 1, :]                                     # centered at c_t, incl. pad rows
    pad_rows = jnp.zeros((n_tiles, 1), jnp.float32)
    pad_rows = pad_rows.at[n_tiles - 1, 0].set(float(rows_pad - rows))
    n_real_t = tile_rows - pad_rows                      # real rows per tile
    c = sums / tile_rows                                 # per-tile center used in-kernel
    mu = jnp.sum(sums, axis=0, keepdims=True) / rows     # global mean (pads sum to 0)
    real_sq = m2 - pad_rows * c * c                      # remove pad-row contribution
    cross = 2.0 * (c - mu) * (sums - n_real_t * c)
    quad = n_real_t * jnp.square(c - mu)
    var = jnp.sum(real_sq + cross + quad, axis=0, keepdims=True) / rows
    var = jnp.maximum(var, 0.0)
    scale = gamma * jax.lax.rsqrt(var + EPS)
    shift = beta - mu * scale
    return scale, shift


def _bn_apply(h, scale, shift, tile_rows, sc=None, shortcut_relu=False,
              out_dtype=jnp.float32):
    rows_pad, cout_pad = h.shape
    n_tiles = rows_pad // tile_rows
    row_spec = pl.BlockSpec((tile_rows, cout_pad), lambda i: (i, 0))
    vec_spec = pl.BlockSpec((1, cout_pad), lambda i: (0, 0))
    if sc is None:
        kernel = bn_relu_kernel
        args = (h, scale, shift)
        in_specs = [row_spec, vec_spec, vec_spec]
        extra_bytes = 0
    else:
        kernel = make_bn_add_kernel(shortcut_relu)
        args = (h, scale, shift, sc)
        in_specs = [row_spec, vec_spec, vec_spec, row_spec]
        extra_bytes = int(sc.size) * sc.dtype.itemsize
    out_itemsize = jnp.dtype(out_dtype).itemsize
    cost = pl.CostEstimate(
        flops=4 * rows_pad * cout_pad,
        transcendentals=0,
        bytes_accessed=(int(h.size) * h.dtype.itemsize + 2 * cout_pad * 4 + extra_bytes
                        + rows_pad * cout_pad * out_itemsize),
    )
    return pl.pallas_call(
        kernel,
        grid=(n_tiles,),
        in_specs=in_specs,
        out_specs=row_spec,
        out_shape=jax.ShapeDtypeStruct((rows_pad, cout_pad), out_dtype),
        compiler_params=pltpu.CompilerParams(
            dimension_semantics=("parallel",),
            vmem_limit_bytes=VMEM_LIMIT_BYTES),
        cost_estimate=cost,
    )(*args)


# ---------------------------------------------------------------------------
# Glue (im2col, layout transposes, parameter padding) — plain JAX
# ---------------------------------------------------------------------------
def _im2col(x_nhwc, stride):
    """3x3, padding=1 patch extraction. Returns ((N*Ho*Wo, 9*C), (N, Ho, Wo))."""
    # TODO(synk): move on-chip (halo row tiles) to cut conv-input HBM traffic ~9x.
    N, H, W, C = x_nhwc.shape
    xp = jnp.pad(x_nhwc, ((0, 0), (1, 1), (1, 1), (0, 0)))
    Ho = (H - 1) // stride + 1
    Wo = (W - 1) // stride + 1
    taps = []
    for kh in range(3):
        for kw in range(3):
            taps.append(xp[:, kh:kh + stride * (Ho - 1) + 1:stride,
                              kw:kw + stride * (Wo - 1) + 1:stride, :])
    p = jnp.stack(taps, axis=3)                       # (N, Ho, Wo, 9, C)
    return p.reshape(N * Ho * Wo, 9 * C), (N, Ho, Wo)


def _w_to_mat(w_oihw, k_pad, cout_pad):
    """(Cout, Cin, 3, 3) -> bf16 (k_pad, cout_pad) matching im2col (kh, kw, cin) order."""
    cout, cin = w_oihw.shape[0], w_oihw.shape[1]
    m = jnp.transpose(w_oihw, (2, 3, 1, 0)).reshape(9 * cin, cout)
    m = jnp.pad(m, ((0, k_pad - 9 * cin), (0, cout_pad - cout)))
    return m.astype(jnp.bfloat16)


def _pad_vec(v, cout_pad):
    return jnp.pad(v.astype(jnp.float32), (0, cout_pad - v.shape[0])).reshape(1, cout_pad)


def basic_block_forward(x_nchw, params, stride=1, option="A",
                        tile_rows=DEFAULT_TILE_ROWS):
    w1, g1, b1, w2, g2, b2 = params
    cout, cin = w1.shape[0], w1.shape[1]
    cout_pad = _round_up(cout, LANE)

    x = jnp.transpose(x_nchw, (0, 2, 3, 1)).astype(jnp.bfloat16)   # NCHW -> NHWC bf16

    # ---- conv1 + bn1 + relu (parallel matmul/stats pass + apply pass) ----
    p1, (N, Ho, Wo) = _im2col(x, stride)
    rows = N * Ho * Wo
    t_rows = tile_rows if rows >= tile_rows else _round_up(rows, 8)
    rows_pad = _round_up(rows, t_rows)
    k1_pad = _round_up(9 * cin, LANE)
    p1 = jnp.pad(p1, ((0, rows_pad - rows), (0, k1_pad - 9 * cin)))
    h1, st1 = _conv_stats(p1, _w_to_mat(w1, k1_pad, cout_pad), t_rows)
    s1, t1 = _bn_scale_shift(st1, _pad_vec(g1, cout_pad), _pad_vec(b1, cout_pad),
                             rows, rows_pad, t_rows)
    y1 = _bn_apply(h1, s1, t1, t_rows, out_dtype=jnp.bfloat16)
    y1 = y1[:rows, :cout].reshape(N, Ho, Wo, cout)     # bf16, feeds conv2 patches directly

    # ---- conv2 + bn2 + residual (parallel matmul/stats pass + apply pass) ----
    p2, _ = _im2col(y1, 1)
    k2_pad = _round_up(9 * cout, LANE)
    p2 = jnp.pad(p2, ((0, rows_pad - rows), (0, k2_pad - 9 * cout)))
    h2, st2 = _conv_stats(p2, _w_to_mat(w2, k2_pad, cout_pad), t_rows)
    s2, t2 = _bn_scale_shift(st2, _pad_vec(g2, cout_pad), _pad_vec(b2, cout_pad),
                             rows, rows_pad, t_rows)

    if stride != 1 or cin != cout:
        if option == "A":
            # PaddedResidual: x[:, ::2, ::2], zero channel pad (cout//4 each side), ReLU.
            # (::2 mirrors the module's hard-coded lambda; like the module it is only
            #  shape-consistent for the standard stride=2 downsample.)
            sc = x[:, ::2, ::2, :]
            pad = cout // 4
            sc = jnp.pad(sc, ((0, 0), (0, 0), (0, 0), (pad, pad + cout_pad - cout)))
            shortcut_relu = True
        else:
            # TODO(synk): option 'B' shortcut (1x1 conv + BN + ReLU) not implemented.
            raise NotImplementedError("option B shortcut not implemented")
    else:
        sc = jnp.pad(x, ((0, 0), (0, 0), (0, 0), (0, cout_pad - cout)))
        shortcut_relu = False
    sc = jnp.pad(sc.reshape(rows, cout_pad), ((0, rows_pad - rows), (0, 0)))  # bf16

    out = _bn_apply(h2, s2, t2, t_rows, sc=sc, shortcut_relu=shortcut_relu,
                    out_dtype=jnp.float32)
    out = out[:rows, :cout].reshape(N, Ho, Wo, cout)
    # NHWC -> NCHW kept for module fidelity (skip if the consumer accepts NHWC).
    return jnp.transpose(out, (0, 3, 1, 2))


# ---------------------------------------------------------------------------
# Pure-JAX reference (for correctness check only)
# ---------------------------------------------------------------------------
def reference_forward(x, params, stride, option="A", cast=None):
    """Training-mode-BN reference. `cast` optionally rounds conv/shortcut operands to
    bf16 (round-trip) to mirror the kernel's MXU / shortcut input precision."""
    if cast is None:
        cast = lambda a: a
    w1, g1, b1, w2, g2, b2 = params
    cout, cin = w1.shape[0], w1.shape[1]

    def conv(t, w, s):
        return jax.lax.conv_general_dilated(
            cast(t), cast(w), (s, s), ((1, 1), (1, 1)),
            dimension_numbers=("NCHW", "OIHW", "NCHW"))

    def bn(t, g, b):
        mean = jnp.mean(t, axis=(0, 2, 3), keepdims=True)
        var = jnp.mean(jnp.square(t - mean), axis=(0, 2, 3), keepdims=True)
        return (t - mean) * jax.lax.rsqrt(var + EPS) * g.reshape(1, -1, 1, 1) \
               + b.reshape(1, -1, 1, 1)

    h = jax.nn.relu(bn(conv(x, w1, stride), g1, b1))
    h = bn(conv(h, w2, 1), g2, b2)
    if stride != 1 or cin != cout:
        sc = cast(x)[:, :, ::2, ::2]
        pad = cout // 4
        sc = jnp.pad(sc, ((0, 0), (pad, pad), (0, 0), (0, 0)))
        sc = jax.nn.relu(sc)
    else:
        sc = cast(x)
    return h + sc.astype(jnp.float32)


# ---------------------------------------------------------------------------
def _make_params(key, cin, cout):
    k1, k2, k3, k4, k5, k6 = jax.random.split(key, 6)
    w1 = 0.1 * jax.random.normal(k1, (cout, cin, 3, 3), jnp.float32)
    w2 = 0.1 * jax.random.normal(k2, (cout, cout, 3, 3), jnp.float32)
    g1 = 1.0 + 0.1 * jax.random.normal(k3, (cout,), jnp.float32)
    b1 = 0.1 * jax.random.normal(k4, (cout,), jnp.float32)
    g2 = 1.0 + 0.1 * jax.random.normal(k5, (cout,), jnp.float32)
    b2 = 0.1 * jax.random.normal(k6, (cout,), jnp.float32)
    return (w1, g1, b1, w2, g2, b2)


def _check(x, params, stride, tile_rows=DEFAULT_TILE_ROWS):
    out = jax.block_until_ready(
        basic_block_forward(x, params, stride=stride, option="A", tile_rows=tile_rows))
    n, cout = x.shape[0], params[0].shape[0]
    ho = (x.shape[2] - 1) // stride + 1
    wo = (x.shape[3] - 1) // stride + 1
    assert out.shape == (n, cout, ho, wo), out.shape

    bf16 = lambda a: a.astype(jnp.bfloat16).astype(jnp.float32)
    # Check vs a reference mirroring the kernel's bf16 MXU / shortcut operands
    # (tolerance covers the additional bf16 storage of the pre-BN intermediate h).
    ref_bf = jax.block_until_ready(reference_forward(x, params, stride, cast=bf16))
    assert jnp.allclose(out, ref_bf, atol=2e-2, rtol=2e-2), \
        float(jnp.max(jnp.abs(out - ref_bf)))
    # Sanity check vs the pure-f32 module semantics.
    ref32 = jax.block_until_ready(reference_forward(x, params, stride))
    assert jnp.allclose(out, ref32, atol=1e-1, rtol=1e-1), \
        float(jnp.max(jnp.abs(out - ref32)))


if __name__ == "__main__":
    key = jax.random.PRNGKey(0)
    kx1, kp1, kx2, kp2 = jax.random.split(key, 4)

    # Config 1: option-'A' padded/strided shortcut (in=4, out=8, stride=2, x = 2x4x16x16);
    # single row tile, no row padding.
    x1 = jax.random.normal(kx1, (2, 4, 16, 16), jnp.float32)
    _check(x1, _make_params(kp1, 4, 8), stride=2)

    # Config 2: identity shortcut; tile_rows=384 forces a multi-tile grid (rows=1024 ->
    # 3 tiles of 384 with 128 zero-padded rows) exercising the parallel per-tile BN
    # statistics and the padded-row variance correction.
    x2 = jax.random.normal(kx2, (4, 16, 16, 16), jnp.float32)
    _check(x2, _make_params(kp2, 16, 16), stride=1, tile_rows=384)

    print("KERNEL_OK")
</pallas_src>

<mosaic_0001>
module attributes {stable_mosaic.version = 11 : i64} {
  func.func @matmul_stats_kernel(%arg0: i32, %arg1: memref<128x128xbf16, #tpu.memory_space<vmem>>, %arg2: memref<128x128xbf16, #tpu.memory_space<vmem>>, %arg3: memref<128x128xbf16, #tpu.memory_space<vmem>>, %arg4: memref<8x128xf32, #tpu.memory_space<vmem>>) attributes {dimension_semantics = [#tpu.dimension_semantics<parallel>], iteration_bounds = array<i64: 1>, scalar_prefetch = 0 : i64, scratch_operands = 0 : i64, tpu.core_type = #tpu.core_type<tc>, window_params = [{transform_indices = @transform_0, window_bounds = array<i64: 128, 128>}, {pipeline_mode = #tpu.pipeline_mode<synchronous>, transform_indices = @transform_1, window_bounds = array<i64: 128, 128>}, {transform_indices = @transform_2, window_bounds = array<i64: 128, 128>}, {transform_indices = @transform_3, window_bounds = array<i64: 8, 128>}]} {
    %c0 = arith.constant 0 : index
    %c0_0 = arith.constant 0 : index
    %0 = vector.load %arg1[%c0, %c0_0] : memref<128x128xbf16, #tpu.memory_space<vmem>>, vector<128x128xbf16>
    %c0_1 = arith.constant 0 : index
    %c0_2 = arith.constant 0 : index
    %1 = vector.load %arg2[%c0_1, %c0_2] : memref<128x128xbf16, #tpu.memory_space<vmem>>, vector<128x128xbf16>
    %cst = arith.constant dense<0.000000e+00> : vector<128x128xf32>
    %2 = tpu.matmul %0, %1, %cst {dimension_numbers = #tpu.dot_dimension_numbers<[1], [0], [0], [1], [0, 0, 1, 1], [], []>} : vector<128x128xbf16>, vector<128x128xbf16>, vector<128x128xf32> -> vector<128x128xf32>
    %3 = arith.truncf %2 : vector<128x128xf32> to vector<128x128xbf16>
    %c0_3 = arith.constant 0 : index
    %c0_4 = arith.constant 0 : index
    %4 = vector.load %arg3[%c0_3, %c0_4] : memref<128x128xbf16, #tpu.memory_space<vmem>>, vector<128x128xbf16>
    tpu.vector_store %arg3[%c0_3, %c0_4], %3 {strides = array<i32>} : memref<128x128xbf16, #tpu.memory_space<vmem>>, vector<128x128xbf16>,
    %cst_5 = arith.constant dense<0.000000e+00> : vector<128xf32>
    %5 = vector.multi_reduction <add>, %2, %cst_5 [0] : vector<128x128xf32> to vector<128xf32>
    %6 = vector.shape_cast %5 : vector<128xf32> to vector<1x128xf32>
    %cst_6 = arith.constant 7.812500e-03 : f32
    %7 = vector.broadcast %cst_6 : f32 to vector<1x128xf32>
    %8 = arith.mulf %6, %7 : vector<1x128xf32>
    %9 = vector.broadcast %8 : vector<1x128xf32> to vector<128x128xf32>
    %10 = arith.subf %2, %9 : vector<128x128xf32>
    %11 = arith.mulf %10, %10 : vector<128x128xf32>
    %cst_7 = arith.constant dense<0.000000e+00> : vector<128xf32>
    %12 = vector.multi_reduction <add>, %11, %cst_7 [0] : vector<128x128xf32> to vector<128xf32>
    %13 = vector.shape_cast %12 : vector<128xf32> to vector<1x128xf32>
    %cst_8 = arith.constant 0.000000e+00 : f32
    %14 = vector.broadcast %cst_8 : f32 to vector<6x128xf32>
    %15 = tpu.concatenate %6, %13, %14 in 0 : vector<1x128xf32>, vector<1x128xf32>, vector<6x128xf32> -> vector<8x128xf32>
    %c0_9 = arith.constant 0 : index
    %c0_10 = arith.constant 0 : index
    %16 = vector.load %arg4[%c0_9, %c0_10] : memref<8x128xf32, #tpu.memory_space<vmem>>, vector<8x128xf32>
    tpu.vector_store %arg4[%c0_9, %c0_10], %15 {strides = array<i32>} : memref<8x128xf32, #tpu.memory_space<vmem>>, vector<8x128xf32>,
    return
  }
  func.func @transform_0(%arg0: i32) -> (i32, i32) {
    %c0_i32 = arith.constant 0 : i32
    %c0_i32_0 = arith.constant 0 : i32
    return %arg0, %c0_i32 : i32, i32
  }
  func.func @transform_1(%arg0: i32) -> (i32, i32) {
    %c0_i32 = arith.constant 0 : i32
    %c0_i32_0 = arith.constant 0 : i32
    %c0_i32_1 = arith.constant 0 : i32
    return %c0_i32, %c0_i32_0 : i32, i32
  }
  func.func @transform_2(%arg0: i32) -> (i32, i32) {
    %c0_i32 = arith.constant 0 : i32
    %c0_i32_0 = arith.constant 0 : i32
    return %arg0, %c0_i32 : i32, i32
  }
  func.func @transform_3(%arg0: i32) -> (i32, i32) {
    %c0_i32 = arith.constant 0 : i32
    %c0_i32_0 = arith.constant 0 : i32
    return %arg0, %c0_i32 : i32, i32
  }
}

</mosaic_0001>

<llo_original>
// kernel: tpu_custom_call.1
$region0: #{tpu_custom_call.1}
  #allocation0 [shape = 'u32[]', space=smem, size = 0x4, offset = 0x4, fixed_abs, tag = 'smem constant byte address 0x4 - core index']
  #allocation1 [shape = 'u32[144,128]{1,0:T(1,128)}', space=vmem, size = 0x12000, scoped, tag = 'internal scratch']
  %s0 = inlined_call_operand.hbm [shape: bf16[128,128], index: 0, kind: input, shape index: {}]
  %s1 = inlined_call_operand.hbm [shape: bf16[128,128], index: 1, kind: input, shape index: {}]
  %s2 = inlined_call_operand.hbm [shape: bf16[128,128], index: 2, kind: output, shape index: {0}]
  %s3 = inlined_call_operand.hbm [shape: f32[8,128], index: 3, kind: output, shape index: {1}]
  %4 = xla_tuple %s2, %s3
  %s5 = sld [smem:[#allocation0]]
  $region34: #{tpu_custom_call.1} parent=0
    _
  %s7 = ssub.s32 1, %s5
  %s8 = scalar_select 0, %s7, %s5
  $region1: #{tpu_custom_call.1} parent=0
    #allocation2 [shape = 'u8[32768]{0}', space=vmem, size = 0x8000, scoped, tag = 'input window, operand 0, single buffered']
    #allocation3 [shape = 's32[1]{0}', space=sflag, size = 0x4, scoped, tag = 'scoped memory for tpu_custom_call.1']
    #allocation4 [shape = 's32[1]{0}', space=sflag, size = 0x4, scoped, tag = 'scoped memory for tpu_custom_call.1']
    #allocation5 [shape = 'u8[32768]{0}', space=vmem, size = 0x8000, scoped, tag = 'input window, operand 1, single buffered']
    #allocation6 [shape = 's32[1]{0}', space=sflag, size = 0x4, scoped, tag = 'scoped memory for tpu_custom_call.1']
    #allocation7 [shape = 'u8[32768]{0}', space=vmem, size = 0x8000, scoped, tag = 'output window, operand 0, single buffered']
    #allocation8 [shape = 'u8[4096]{0}', space=vmem, size = 0x1000, scoped, tag = 'output window, operand 1, single buffered']
    #allocation9 [shape = 's32[1]{0}', space=sflag, size = 0x4, scoped, tag = 'scoped memory for tpu_custom_call.1']
    %9 = vsyncpa [#allocation3], 0
    %10 = vsyncpa [#allocation6], 0
    %11 = vsyncpa [#allocation4], 0
    %12 = vsyncpa [#allocation9], 0
    // Predicated region
    $region2: #{tpu_custom_call.1} parent=1 // pred_check
      _
    $region3: #{tpu_custom_call.1} parent=1 // pred_check_branch
      %14 = sbr.rel (0) target = $region5
    $region4: #{tpu_custom_call.1} parent=1 // pred_region
      %s16 = ssub.s32 1024, 1024
      %17 = vsyncadd [#allocation3], %s16
      %s18 = sshll.u32 [#allocation2], 4
      %s19 = int_to_ptr.vmem [resolvable:$true] %s18
      %24 = dma.hbm_to_vmem [thread:$0]  %s0, 1024, %s19, [#allocation3], 64, 64, 4
    $region5: #{tpu_custom_call.1} parent=1 // pred_fallthru
      _
    // Predicated region
    $region6: #{tpu_custom_call.1} parent=1 // pred_check
      _
    $region7: #{tpu_custom_call.1} parent=1 // pred_check_branch
      %26 = sbr.rel (0) target = $region9
    $region8: #{tpu_custom_call.1} parent=1 // pred_region
      %s28 = ssub.s32 1024, 1024
      %29 = vsyncadd [#allocation6], %s28
      %s30 = sshll.u32 [#allocation5], 4
      %s31 = int_to_ptr.vmem [resolvable:$true] %s30
      %36 = dma.hbm_to_vmem [thread:$0]  %s1, 1024, %s31, [#allocation6], 64, 64, 4
    $region9: #{tpu_custom_call.1} parent=1 // pred_fallthru
      _
    // Predicated region
    $region10: #{tpu_custom_call.1} parent=1 // pred_check
      _
    $region11: #{tpu_custom_call.1} parent=1 // pred_check_branch
      %38 = sbr.rel (0) target = $region13
    $region12: #{tpu_custom_call.1} parent=1 // pred_region
      %39 = dma.done [#allocation3], 1024
    $region13: #{tpu_custom_call.1} parent=1 // pred_fallthru
      _
    // Predicated region
    $region14: #{tpu_custom_call.1} parent=1 // pred_check
      _
    $region15: #{tpu_custom_call.1} parent=1 // pred_check_branch
      %41 = sbr.rel (0) target = $region17
    $region16: #{tpu_custom_call.1} parent=1 // pred_region
      %42 = dma.done [#allocation6], 1024
    $region17: #{tpu_custom_call.1} parent=1 // pred_fallthru
      _
    %v44 = vld [vmem:[#allocation2] sm:$0xf]
    %v45 = vld [vmem:[#allocation2 + $0x4] sm:$0xf]
    %v46 = vld [vmem:[#allocation2 + $0x8] sm:$0xf]
    %v47 = vld [vmem:[#allocation2 + $0xc] sm:$0xf]
    %v48 = vld [vmem:[#allocation2 + $0x10] sm:$0xf]
    %v49 = vld [vmem:[#allocation2 + $0x14] sm:$0xf]
    %v50 = vld [vmem:[#allocation2 + $0x18] sm:$0xf]
    %v51 = vld [vmem:[#allocation2 + $0x1c] sm:$0xf]
    %v52 = vld [vmem:[#allocation2 + $0x20] sm:$0xf]
    %v53 = vld [vmem:[#allocation2 + $0x24] sm:$0xf]
    %v54 = vld [vmem:[#allocation2 + $0x28] sm:$0xf]
    %v55 = vld [vmem:[#allocation2 + $0x2c] sm:$0xf]
    %v56 = vld [vmem:[#allocation2 + $0x30] sm:$0xf]
    %v57 = vld [vmem:[#allocation2 + $0x34] sm:$0xf]
    %v58 = vld [vmem:[#allocation2 + $0x38] sm:$0xf]
    %v59 = vld [vmem:[#allocation2 + $0x3c] sm:$0xf]
    %v60 = vld [vmem:[#allocation5] sm:$0xf]
    %v61 = vld [vmem:[#allocation5 + $0x4] sm:$0xf]
    %v62 = vld [vmem:[#allocation5 + $0x8] sm:$0xf]
    %v63 = vld [vmem:[#allocation5 + $0xc] sm:$0xf]
    %v64 = vld [vmem:[#allocation5 + $0x10] sm:$0xf]
    %v65 = vld [vmem:[#allocation5 + $0x14] sm:$0xf]
    %v66 = vld [vmem:[#allocation5 + $0x18] sm:$0xf]
    %v67 = vld [vmem:[#allocation5 + $0x1c] sm:$0xf]
    %v68 = vld [vmem:[#allocation5 + $0x20] sm:$0xf]
    %v69 = vld [vmem:[#allocation5 + $0x24] sm:$0xf]
    %v70 = vld [vmem:[#allocation5 + $0x28] sm:$0xf]
    %v71 = vld [vmem:[#allocation5 + $0x2c] sm:$0xf]
    %v72 = vld [vmem:[#allocation5 + $0x30] sm:$0xf]
    %v73 = vld [vmem:[#allocation5 + $0x34] sm:$0xf]
    %v74 = vld [vmem:[#allocation5 + $0x38] sm:$0xf]
    %v75 = vld [vmem:[#allocation5 + $0x3c] sm:$0xf]
    %v92 = vunpack.c.l.b16 %v44
    %v93 = vunpack.c.l.b16 %v45
    %v94 = vunpack.c.l.b16 %v46
    %v95 = vunpack.c.l.b16 %v47
    %v96 = vunpack.c.l.b16 %v48
    %v97 = vunpack.c.l.b16 %v49
    %v98 = vunpack.c.l.b16 %v50
    %v99 = vunpack.c.l.b16 %v51
    %v100 = vunpack.c.l.b16 %v52
    %v101 = vunpack.c.l.b16 %v53
    %v102 = vunpack.c.l.b16 %v54
    %v103 = vunpack.c.l.b16 %v55
    %v104 = vunpack.c.l.b16 %v56
    %v105 = vunpack.c.l.b16 %v57
    %v106 = vunpack.c.l.b16 %v58
    %v107 = vunpack.c.l.b16 %v59
    %v108 = vpack.c.b16 %v93, %v92
    %v109 = vpack.c.b16 %v95, %v94
    %v110 = vpack.c.b16 %v97, %v96
    %v111 = vpack.c.b16 %v99, %v98
    %v112 = vpack.c.b16 %v101, %v100
    %v113 = vpack.c.b16 %v103, %v102
    %v114 = vpack.c.b16 %v105, %v104
    %v115 = vpack.c.b16 %v107, %v106
    %v140 = vunpack.c.l.b16 %v60
    %v141 = vunpack.c.l.b16 %v61
    %v142 = vunpack.c.l.b16 %v62
    %v143 = vunpack.c.l.b16 %v63
    %v144 = vunpack.c.l.b16 %v64
    %v145 = vunpack.c.l.b16 %v65
    %v146 = vunpack.c.l.b16 %v66
    %v147 = vunpack.c.l.b16 %v67
    %v148 = vunpack.c.l.b16 %v68
    %v149 = vunpack.c.l.b16 %v69
    %v150 = vunpack.c.l.b16 %v70
    %v151 = vunpack.c.l.b16 %v71
    %v152 = vunpack.c.l.b16 %v72
    %v153 = vunpack.c.l.b16 %v73
    %v154 = vunpack.c.l.b16 %v74
    %v155 = vunpack.c.l.b16 %v75
    %v156 = vpack.c.b16 %v141, %v140
    %v157 = vpack.c.b16 %v143, %v142
    %v158 = vpack.c.b16 %v145, %v144
    %v159 = vpack.c.b16 %v147, %v146
    %v160 = vpack.c.b16 %v149, %v148
    %v161 = vpack.c.b16 %v151, %v150
    %v162 = vpack.c.b16 %v153, %v152
    %v163 = vpack.c.b16 %v155, %v154
    %172 = vmatprep.subr.bf16.mxu0 0
    %173 = vmatpush1.bf16.msra.mxu0 %v156
    %174 = vmatprep.subr.bf16.mxu0 0
    %175 = vmatpush1.bf16.msra.mxu0 %v157
    %176 = vmatprep.subr.bf16.mxu0 0
    %177 = vmatpush1.bf16.msra.mxu0 %v158
    %178 = vmatprep.subr.bf16.mxu0 0
    %179 = vmatpush1.bf16.msra.mxu0 %v159
    %180 = vmatprep.subr.bf16.mxu0 0
    %181 = vmatpush1.bf16.msra.mxu0 %v160
    %182 = vmatprep.subr.bf16.mxu0 0
    %183 = vmatpush1.bf16.msra.mxu0 %v161
    %184 = vmatprep.subr.bf16.mxu0 0
    %185 = vmatpush1.bf16.msra.mxu0 %v162
    %186 = vmatprep.subr.bf16.mxu0 0
    %187 = vmatpush1.bf16.msra.mxu0 %v163
    %188 = vmatprep.subr.bf16.mxu0 0
    %189 = vmatpush1.bf16.msra.mxu0 0
    %190 = vmatprep.subr.bf16.mxu0 0
    %191 = vmatpush1.bf16.msra.mxu0 0
    %192 = vmatprep.subr.bf16.mxu0 0
    %193 = vmatpush1.bf16.msra.mxu0 0
    %194 = vmatprep.subr.bf16.mxu0 0
    %195 = vmatpush1.bf16.msra.mxu0 0
    %196 = vmatprep.subr.bf16.mxu0 0
    %197 = vmatpush1.bf16.msra.mxu0 0
    %198 = vmatprep.subr.bf16.mxu0 0
    %199 = vmatpush1.bf16.msra.mxu0 0
    %200 = vmatprep.subr.bf16.mxu0 0
    %201 = vmatpush1.bf16.msra.mxu0 0
    %202 = vmatprep.subr.bf16.mxu0 0
    %203 = vmatpush1.bf16.msra.mxu0 0
    %204 = vmatprep.mubr.bf16.mxu0 0
    %205 = vmatmul.mubr.bf16.gmra.mrb[0].mxu0 %v108
    %v206 = vpop.f32.mrb[0].mxu0
    %v207 = vadd.f32 0.0, %v206
    %v208 = vpop.f32.mrb[0].mxu0
    %v209 = vpop.f32.mrb[0].mxu0
    %v210 = vadd.f32 0.0, %v209
    %v211 = vpop.f32.mrb[0].mxu0
    %212 = vmatprep.mubr.bf16.mxu0 0
    %213 = vmatmul.mubr.bf16.gmra.mrb[0].mxu0 %v109
    %v214 = vpop.f32.mrb[0].mxu0
    %v215 = vadd.f32 0.0, %v214
    %v216 = vpop.f32.mrb[0].mxu0
    %v217 = vpop.f32.mrb[0].mxu0
    %v218 = vadd.f32 0.0, %v217
    %v219 = vpop.f32.mrb[0].mxu0
    %220 = vmatprep.mubr.bf16.mxu0 0
    %221 = vmatmul.mubr.bf16.gmra.mrb[0].mxu0 %v110
    %v222 = vpop.f32.mrb[0].mxu0
    %v223 = vadd.f32 0.0, %v222
    %v224 = vpop.f32.mrb[0].mxu0
    %v225 = vpop.f32.mrb[0].mxu0
    %v226 = vadd.f32 0.0, %v225
    %v227 = vpop.f32.mrb[0].mxu0
    %228 = vmatprep.mubr.bf16.mxu0 0
    %229 = vmatmul.mubr.bf16.gmra.mrb[0].mxu0 %v111
    %v230 = vpop.f32.mrb[0].mxu0
    %v231 = vadd.f32 0.0, %v230
    %v232 = vpop.f32.mrb[0].mxu0
    %v233 = vpop.f32.mrb[0].mxu0
    %v234 = vadd.f32 0.0, %v233
    %v235 = vpop.f32.mrb[0].mxu0
    %236 = vmatprep.mubr.bf16.mxu0 0
    %237 = vmatmul.mubr.bf16.gmra.mrb[0].mxu0 %v112
    %v238 = vpop.f32.mrb[0].mxu0
    %v239 = vadd.f32 0.0, %v238
    %v240 = vpop.f32.mrb[0].mxu0
    %v241 = vpop.f32.mrb[0].mxu0
    %v242 = vadd.f32 0.0, %v241
    %v243 = vpop.f32.mrb[0].mxu0
    %244 = vmatprep.mubr.bf16.mxu0 0
    %245 = vmatmul.mubr.bf16.gmra.mrb[0].mxu0 %v113
    %v246 = vpop.f32.mrb[0].mxu0
    %v247 = vadd.f32 0.0, %v246
    %v248 = vpop.f32.mrb[0].mxu0
    %v249 = vpop.f32.mrb[0].mxu0
    %v250 = vadd.f32 0.0, %v249
    %v251 = vpop.f32.mrb[0].mxu0
    %252 = vmatprep.mubr.bf16.mxu0 0
    %253 = vmatmul.mubr.bf16.gmra.mrb[0].mxu0 %v114
    %v254 = vpop.f32.mrb[0].mxu0
    %v255 = vadd.f32 0.0, %v254
    %v256 = vpop.f32.mrb[0].mxu0
    %v257 = vpop.f32.mrb[0].mxu0
    %v258 = vadd.f32 0.0, %v257
    %v259 = vpop.f32.mrb[0].mxu0
    %260 = vmatprep.mubr.bf16.mxu0 0
    %261 = vmatmul.mubr.bf16.gmra.mrb[0].mxu0 %v115
    %v262 = vpop.f32.mrb[0].mxu0
    %v263 = vadd.f32 0.0, %v262
    %v264 = vpop.f32.mrb[0].mxu0
    %v265 = vpop.f32.mrb[0].mxu0
    %v266 = vadd.f32 0.0, %v265
    %v267 = vpop.f32.mrb[0].mxu0
    %268 = vdwg.mxu0
    %v269 = vpack.c.bf16 %v210, %v207
    %v270 = vpack.c.bf16 %v218, %v215
    %v271 = vpack.c.bf16 %v226, %v223
    %v272 = vpack.c.bf16 %v234, %v231
    %v273 = vpack.c.bf16 %v242, %v239
    %v274 = vpack.c.bf16 %v250, %v247
    %v275 = vpack.c.bf16 %v258, %v255
    %v276 = vpack.c.bf16 %v266, %v263
    %v285 = vunpack.c.l.b16 %v269
    %v286 = vunpack.c.h.b16 %v269
    %v287 = vunpack.c.l.b16 %v270
    %v288 = vunpack.c.h.b16 %v270
    %v289 = vunpack.c.l.b16 %v271
    %v290 = vunpack.c.h.b16 %v271
    %v291 = vunpack.c.l.b16 %v272
    %v292 = vunpack.c.h.b16 %v272
    %v293 = vunpack.c.l.b16 %v273
    %v294 = vunpack.c.h.b16 %v273
    %v295 = vunpack.c.l.b16 %v274
    %v296 = vunpack.c.h.b16 %v274
    %v297 = vunpack.c.l.b16 %v275
    %v298 = vunpack.c.h.b16 %v275
    %v299 = vunpack.c.l.b16 %v276
    %v300 = vunpack.c.h.b16 %v276
    %v301 = vpack.c.b16 %v285, %v285
    %v302 = vpack.c.b16 %v286, %v286
    %v303 = vpack.c.b16 %v287, %v287
    %v304 = vpack.c.b16 %v288, %v288
    %v305 = vpack.c.b16 %v289, %v289
    %v306 = vpack.c.b16 %v290, %v290
    %v307 = vpack.c.b16 %v291, %v291
    %v308 = vpack.c.b16 %v292, %v292
    %v309 = vpack.c.b16 %v293, %v293
    %v310 = vpack.c.b16 %v294, %v294
    %v311 = vpack.c.b16 %v295, %v295
    %v312 = vpack.c.b16 %v296, %v296
    %v313 = vpack.c.b16 %v297, %v297
    %v314 = vpack.c.b16 %v298, %v298
    %v315 = vpack.c.b16 %v299, %v299
    %v316 = vpack.c.b16 %v300, %v300
    %333 = vst [vmem:[#allocation7] sm:$0xf] %v301
    %334 = vst [vmem:[#allocation7 + $0x4] sm:$0xf] %v302
    %335 = vst [vmem:[#allocation7 + $0x8] sm:$0xf] %v303
    %336 = vst [vmem:[#allocation7 + $0xc] sm:$0xf] %v304
    %337 = vst [vmem:[#allocation7 + $0x10] sm:$0xf] %v305
    %338 = vst [vmem:[#allocation7 + $0x14] sm:$0xf] %v306
    %339 = vst [vmem:[#allocation7 + $0x18] sm:$0xf] %v307
    %340 = vst [vmem:[#allocation7 + $0x1c] sm:$0xf] %v308
    %341 = vst [vmem:[#allocation7 + $0x20] sm:$0xf] %v309
    %342 = vst [vmem:[#allocation7 + $0x24] sm:$0xf] %v310
    %343 = vst [vmem:[#allocation7 + $0x28] sm:$0xf] %v311
    %344 = vst [vmem:[#allocation7 + $0x2c] sm:$0xf] %v312
    %345 = vst [vmem:[#allocation7 + $0x30] sm:$0xf] %v313
    %346 = vst [vmem:[#allocation7 + $0x34] sm:$0xf] %v314
    %347 = vst [vmem:[#allocation7 + $0x38] sm:$0xf] %v315
    %348 = vst [vmem:[#allocation7 + $0x3c] sm:$0xf] %v316
    %v349 = vadd.f32 %v207, %v210
    %v350 = vadd.f32 %v349, %v215
    %v351 = vadd.f32 %v350, %v218
    %v352 = vadd.f32 %v351, %v223
    %v353 = vadd.f32 %v352, %v226
    %v354 = vadd.f32 %v353, %v231
    %v355 = vadd.f32 %v354, %v234
    %v356 = vadd.f32 %v355, %v239
    %v357 = vadd.f32 %v356, %v242
    %v358 = vadd.f32 %v357, %v247
    %v359 = vadd.f32 %v358, %v250
    %v360 = vadd.f32 %v359, %v255
    %v361 = vadd.f32 %v360, %v258
    %v362 = vadd.f32 %v361, %v263
    %v363 = vadd.f32 %v362, %v266
    %v364 = vrot.slane %v363, 4
    %v365 = vadd.f32 %v363, %v364
    %v366 = vrot.slane %v365, 2
    %v367 = vadd.f32 %v365, %v366
    %v368 = vrot.slane %v367, 1
    %v369 = vadd.f32 %v367, %v368
    %v370 = vmul.f32 %v369, 0.0078125
    %v371 = vsub.f32 %v207, %v370
    %v372 = vsub.f32 %v210, %v370
    %v373 = vsub.f32 %v215, %v370
    %v374 = vsub.f32 %v218, %v370
    %v375 = vsub.f32 %v223, %v370
    %v376 = vsub.f32 %v226, %v370
    %v377 = vsub.f32 %v231, %v370
    %v378 = vsub.f32 %v234, %v370
    %v379 = vsub.f32 %v239, %v370
    %v380 = vsub.f32 %v242, %v370
    %v381 = vsub.f32 %v247, %v370
    %v382 = vsub.f32 %v250, %v370
    %v383 = vsub.f32 %v255, %v370
    %v384 = vsub.f32 %v258, %v370
    %v385 = vsub.f32 %v263, %v370
    %v386 = vsub.f32 %v266, %v370
    %v387 = vmul.f32 %v371, %v371
    %v388 = vmul.f32 %v372, %v372
    %v389 = vmul.f32 %v373, %v373
    %v390 = vmul.f32 %v374, %v374
    %v391 = vmul.f32 %v375, %v375
    %v392 = vmul.f32 %v376, %v376
    %v393 = vmul.f32 %v377, %v377
    %v394 = vmul.f32 %v378, %v378
    %v395 = vmul.f32 %v379, %v379
    %v396 = vmul.f32 %v380, %v380
    %v397 = vmul.f32 %v381, %v381
    %v398 = vmul.f32 %v382, %v382
    %v399 = vmul.f32 %v383, %v383
    %v400 = vmul.f32 %v384, %v384
    %v401 = vmul.f32 %v385, %v385
    %v402 = vmul.f32 %v386, %v386
    %v403 = vadd.f32 %v387, %v388
    %v404 = vadd.f32 %v403, %v389
    %v405 = vadd.f32 %v404, %v390
    %v406 = vadd.f32 %v405, %v391
    %v407 = vadd.f32 %v406, %v392
    %v408 = vadd.f32 %v407, %v393
    %v409 = vadd.f32 %v408, %v394
    %v410 = vadd.f32 %v409, %v395
    %v411 = vadd.f32 %v410, %v396
    %v412 = vadd.f32 %v411, %v397
    %v413 = vadd.f32 %v412, %v398
    %v414 = vadd.f32 %v413, %v399
    %v415 = vadd.f32 %v414, %v400
    %v416 = vadd.f32 %v415, %v401
    %v417 = vadd.f32 %v416, %v402
    %v418 = vrot.slane %v417, 4
    %v419 = vadd.f32 %v417, %v418
    %v420 = vrot.slane %v419, 2
    %v421 = vadd.f32 %v419, %v420
    %v422 = vrot.slane %v421, 1
    %v423 = vadd.f32 %v421, %v422
    %vm424 = vcmask 1040384
    %v425 = vsel %vm424, %v369, %v423
    %vm426 = vcmask 1041408
    %v427 = vsel %vm426, %v425, 0.0
    %428 = vst [vmem:[#allocation8] sm:$0xff] %v427
    // Predicated region
    $region18: #{tpu_custom_call.1} parent=1 // pred_check
      _
    $region19: #{tpu_custom_call.1} parent=1 // pred_check_branch
      %430 = sbr.rel (0) target = $region21
    $region20: #{tpu_custom_call.1} parent=1 // pred_region
      %s432 = ssub.s32 1024, 1024
      %433 = vsyncadd [#allocation4], %s432
      %s434 = sshll.u32 [#allocation7], 4
      %s435 = int_to_ptr.vmem [resolvable:$true] %s434
      %440 = dma.vmem_to_hbm [thread:$0]  %s435, 1024, %s2, [#allocation4], 64, 64, 4
    $region21: #{tpu_custom_call.1} parent=1 // pred_fallthru
      _
    // Predicated region
    $region22: #{tpu_custom_call.1} parent=1 // pred_check
      _
    $region23: #{tpu_custom_call.1} parent=1 // pred_check_branch
      %442 = sbr.rel (0) target = $region25
    $region24: #{tpu_custom_call.1} parent=1 // pred_region
      %s444 = ssub.s32 128, 128
      %445 = vsyncadd [#allocation9], %s444
      %s447 = sshll.u32 [#allocation8], 4
      %s448 = int_to_ptr.vmem [resolvable:$true] %s447
      %450 = dma.vmem_to_hbm [thread:$0]  %s448, 128, %s3, [#allocation9]
    $region25: #{tpu_custom_call.1} parent=1 // pred_fallthru
      _
    // Predicated region
    $region26: #{tpu_custom_call.1} parent=1 // pred_check
      _
    $region27: #{tpu_custom_call.1} parent=1 // pred_check_branch
      %452 = sbr.rel (0) target = $region29
    $region28: #{tpu_custom_call.1} parent=1 // pred_region
      %453 = dma.done [#allocation4], 1024
    $region29: #{tpu_custom_call.1} parent=1 // pred_fallthru
      _
    // Predicated region
    $region30: #{tpu_custom_call.1} parent=1 // pred_check
      _
    $region31: #{tpu_custom_call.1} parent=1 // pred_check_branch
      %455 = sbr.rel (0) target = $region33
    $region32: #{tpu_custom_call.1} parent=1 // pred_region
      %456 = dma.done [#allocation9], 128
    $region33: #{tpu_custom_call.1} parent=1 // pred_fallthru
      _
    %457 = vsyncpa [#allocation3], 1
    %458 = vsyncpa [#allocation6], 1
    %459 = vsyncpa [#allocation4], 1
    %460 = vsyncpa [#allocation9], 1

</llo_original>
